<compile_context>
chip_gen: v7x
topology: tpu7x:2x2x1
jax: 0.10.0
libtpu: 0.0.40
codegen_flags: <defaults>
</compile_context>

<pallas_src>
import functools

import jax
import jax.numpy as jnp
from jax.experimental import pallas as pl
from jax.experimental.pallas import tpu as pltpu

# add_noise(test=True) constants (match the PyTorch module)
_SIG_SHOT_MIN, _SIG_SHOT_MAX = 0.0001, 0.01
_SIG_READ_MIN, _SIG_READ_MAX = 0.001, 0.03
_SIG_SHOT_TEST = (_SIG_SHOT_MAX - _SIG_SHOT_MIN) / 2.0
_SIG_READ_TEST = (_SIG_READ_MAX - _SIG_READ_MIN) / 2.0

_LANES = 128
_SUBLANES = 8
_TARGET_TILE_ROWS = 1024          # ~512 KiB per f32 buffer per grid step


def _post_process_noise_kernel(meas_ref, noise_ref, out_ref, *,
                               scale, sig_shot, sig_read):
    # measurement/exp_time * (exp_time/8) == measurement * scale  (scale == 1/8)
    img = meas_ref[...] * scale
    # shot noise (std = sqrt(img)*sig_shot) + read noise (std = sig_read), both
    # independent zero-mean Gaussians -> single Gaussian with combined variance.
    # NOTE: assumes non-negative measurement (true for accumulated video frames).
    std = jnp.sqrt(img * (sig_shot * sig_shot) + sig_read * sig_read)
    out_ref[...] = jnp.clip(img + std * noise_ref[...], 0.0, 1.0)


def _post_process_clean_kernel(meas_ref, out_ref, *, scale):
    out_ref[...] = jnp.clip(meas_ref[...] * scale, 0.0, 1.0)


def _pick_tile_rows(rows, target=_TARGET_TILE_ROWS):
    """Largest multiple of 8 that divides `rows` and is <= target."""
    t = min(rows, target)
    t -= t % _SUBLANES
    t = max(t, _SUBLANES)
    while t > _SUBLANES and rows % t != 0:
        t -= _SUBLANES
    return t


def shutter_post_process(measurement, exp_time, *, test=True, key=None,
                         with_noise=True):
    """JAX/Pallas equivalent of ShutterBase.post_process (test=True path).

    measurement: float array (e.g. (B, C, H, W)), non-negative.
    exp_time:    python float / int.
    key:         jax PRNGKey used for the Gaussian noise (deterministic per key).
    """
    assert test, "only the deterministic (test=True) noise-sigma path is implemented"
    # TODO(synk): test=False draws sig_shot/sig_read randomly per call on the host
    # in PyTorch; not implemented here.

    orig_shape = measurement.shape
    total = measurement.size

    # Flatten to (rows, 128); pad so rows is a multiple of 8 (the (8,128) tile rule).
    chunk = _LANES * _SUBLANES
    padded_total = ((total + chunk - 1) // chunk) * chunk
    flat = measurement.reshape(-1).astype(jnp.float32)
    if padded_total != total:
        flat = jnp.pad(flat, (0, padded_total - total))
    rows = padded_total // _LANES
    meas2d = flat.reshape(rows, _LANES)

    tile_rows = _pick_tile_rows(rows)
    grid = (rows // tile_rows,)

    exp_time = float(exp_time)
    scale = (exp_time / 8.0) / exp_time      # == 0.125: divide + ratio folded

    blk = pl.BlockSpec((tile_rows, _LANES), lambda i: (i, 0))
    cparams = pltpu.CompilerParams(
        dimension_semantics=("parallel",),
        vmem_limit_bytes=32 * 1024 * 1024,
    )

    if with_noise:
        if key is None:
            key = jax.random.PRNGKey(0)
        noise2d = jax.random.normal(key, (rows, _LANES), dtype=jnp.float32)
        kernel = functools.partial(
            _post_process_noise_kernel,
            scale=scale,
            sig_shot=float(_SIG_SHOT_TEST),
            sig_read=float(_SIG_READ_TEST),
        )
        out2d = pl.pallas_call(
            kernel,
            out_shape=jax.ShapeDtypeStruct((rows, _LANES), jnp.float32),
            grid=grid,
            in_specs=[blk, blk],
            out_specs=blk,
            compiler_params=cparams,
        )(meas2d, noise2d)
    else:
        kernel = functools.partial(_post_process_clean_kernel, scale=scale)
        out2d = pl.pallas_call(
            kernel,
            out_shape=jax.ShapeDtypeStruct((rows, _LANES), jnp.float32),
            grid=grid,
            in_specs=[blk],
            out_specs=blk,
            compiler_params=cparams,
        )(meas2d)

    return out2d.reshape(-1)[:total].reshape(orig_shape)


if __name__ == "__main__":
    root = jax.random.PRNGKey(0)
    data_key, noise_key = jax.random.split(root)

    B, C, H, W = 2, 4, 16, 16            # B*C*H*W = 2048 = 16 * 128
    exp_time = 4.0

    # non-negative "measurement" (as produced by accumulating video frames)
    measurement = jax.random.uniform(
        data_key, (B, C, H, W), dtype=jnp.float32, minval=0.0, maxval=exp_time)

    ref_clean = jnp.clip((measurement / exp_time) * (exp_time / 8.0), 0.0, 1.0)

    # --- 1) deterministic math path (noise disabled) vs pure-JAX reference ---
    clean = jax.block_until_ready(
        shutter_post_process(measurement, exp_time, test=True, with_noise=False))
    assert clean.shape == (B, C, H, W) and clean.dtype == jnp.float32
    assert float(jnp.max(jnp.abs(clean - ref_clean))) < 1e-6

    # --- 2) full post_process with Gaussian noise ----------------------------
    out = jax.block_until_ready(
        shutter_post_process(measurement, exp_time, test=True, key=noise_key))
    out2 = jax.block_until_ready(
        shutter_post_process(measurement, exp_time, test=True, key=noise_key))

    assert out.shape == (B, C, H, W) and out.dtype == jnp.float32
    assert bool(jnp.all(jnp.isfinite(out)))
    assert bool(jnp.all((out >= 0.0) & (out <= 1.0)))      # clamp respected
    assert bool(jnp.all(out == out2))                       # deterministic per key

    # Exact check against a pure-JAX reference using the same noise stream.
    rows = measurement.size // _LANES
    noise = jax.random.normal(noise_key, (rows, _LANES), jnp.float32).reshape(
        measurement.shape)
    img = measurement / 8.0
    std = jnp.sqrt(img * (_SIG_SHOT_TEST ** 2) + _SIG_READ_TEST ** 2)
    ref_noisy = jnp.clip(img + std * noise, 0.0, 1.0)
    assert float(jnp.max(jnp.abs(out - ref_noisy))) < 1e-6

    # Statistical check that the noise matches the original two-draw formulation
    # (zero-mean, sigma^2 = img*sig_shot^2 + sig_read^2).
    resid = (out - ref_clean).reshape(-1)
    exp_sigma = float(jnp.sqrt(jnp.mean(
        ref_clean * (_SIG_SHOT_TEST ** 2) + _SIG_READ_TEST ** 2)))
    assert abs(float(jnp.mean(resid))) < 5e-3
    assert 0.5 * exp_sigma < float(jnp.std(resid)) < 2.0 * exp_sigma
    assert float(jnp.max(jnp.abs(resid))) > 1e-3            # noise actually applied

    print("KERNEL_OK")
</pallas_src>

<mosaic_0001>
module attributes {stable_mosaic.version = 11 : i64} {
  func.func @_post_process_clean_kernel(%arg0: i32, %arg1: memref<16x128xf32, #tpu.memory_space<vmem>>, %arg2: memref<16x128xf32, #tpu.memory_space<vmem>>) attributes {dimension_semantics = [#tpu.dimension_semantics<parallel>], iteration_bounds = array<i64: 1>, scalar_prefetch = 0 : i64, scratch_operands = 0 : i64, tpu.core_type = #tpu.core_type<tc>, window_params = [{transform_indices = @transform_0, window_bounds = array<i64: 16, 128>}, {transform_indices = @transform_1, window_bounds = array<i64: 16, 128>}]} {
    %c0 = arith.constant 0 : index
    %c0_0 = arith.constant 0 : index
    %0 = vector.load %arg1[%c0, %c0_0] : memref<16x128xf32, #tpu.memory_space<vmem>>, vector<16x128xf32>
    %cst = arith.constant 1.250000e-01 : f32
    %1 = vector.broadcast %cst : f32 to vector<16x128xf32>
    %2 = arith.mulf %0, %1 : vector<16x128xf32>
    %cst_1 = arith.constant 0.000000e+00 : f32
    %cst_2 = arith.constant 1.000000e+00 : f32
    %3 = vector.broadcast %cst_1 : f32 to vector<16x128xf32>
    %4 = arith.maximumf %3, %2 : vector<16x128xf32>
    %5 = vector.broadcast %cst_2 : f32 to vector<16x128xf32>
    %6 = arith.minimumf %5, %4 : vector<16x128xf32>
    %c0_3 = arith.constant 0 : index
    %c0_4 = arith.constant 0 : index
    %7 = vector.load %arg2[%c0_3, %c0_4] : memref<16x128xf32, #tpu.memory_space<vmem>>, vector<16x128xf32>
    tpu.vector_store %arg2[%c0_3, %c0_4], %6 {strides = array<i32>} : memref<16x128xf32, #tpu.memory_space<vmem>>, vector<16x128xf32>,
    return
  }
  func.func @transform_0(%arg0: i32) -> (i32, i32) {
    %c0_i32 = arith.constant 0 : i32
    %c0_i32_0 = arith.constant 0 : i32
    return %arg0, %c0_i32 : i32, i32
  }
  func.func @transform_1(%arg0: i32) -> (i32, i32) {
    %c0_i32 = arith.constant 0 : i32
    %c0_i32_0 = arith.constant 0 : i32
    return %arg0, %c0_i32 : i32, i32
  }
}

</mosaic_0001>

<llo_original>
// kernel: tpu_custom_call.1
$region0: #{tpu_custom_call.1}
  #allocation0 [shape = 'u32[]', space=smem, size = 0x4, offset = 0x4, fixed_abs, tag = 'smem constant byte address 0x4 - core index']
  #allocation1 [shape = 'u32[144,128]{1,0:T(1,128)}', space=vmem, size = 0x12000, scoped, tag = 'internal scratch']
  %s0 = inlined_call_operand.hbm [shape: f32[16,128], index: 0, kind: input, shape index: {}]
  %s1 = inlined_call_operand.hbm [shape: f32[16,128], index: 1, kind: output, shape index: {}]
  %s2 = sld [smem:[#allocation0]]
  $region18: #{tpu_custom_call.1} parent=0
    _
  %s4 = ssub.s32 1, %s2
  %s5 = scalar_select 0, %s4, %s2
  $region1: #{tpu_custom_call.1} parent=0
    #allocation2 [shape = 'u8[8192]{0}', space=vmem, size = 0x2000, scoped, tag = 'input window, operand 0, single buffered']
    #allocation3 [shape = 's32[1]{0}', space=sflag, size = 0x4, scoped, tag = 'scoped memory for tpu_custom_call.1']
    #allocation4 [shape = 's32[1]{0}', space=sflag, size = 0x4, scoped, tag = 'scoped memory for tpu_custom_call.1']
    #allocation5 [shape = 'u8[8192]{0}', space=vmem, size = 0x2000, scoped, tag = 'output window, operand 0, single buffered']
    %6 = vsyncpa [#allocation3], 0
    %7 = vsyncpa [#allocation4], 0
    // Predicated region
    $region2: #{tpu_custom_call.1} parent=1 // pred_check
      _
    $region3: #{tpu_custom_call.1} parent=1 // pred_check_branch
      %9 = sbr.rel (0) target = $region5
    $region4: #{tpu_custom_call.1} parent=1 // pred_region
      %s11 = ssub.s32 256, 256
      %12 = vsyncadd [#allocation3], %s11
      %s13 = sshll.u32 [#allocation2], 4
      %s14 = int_to_ptr.vmem [resolvable:$true] %s13
      %19 = dma.hbm_to_vmem [thread:$0]  %s0, 256, %s14, [#allocation3], 128, 128, 8
    $region5: #{tpu_custom_call.1} parent=1 // pred_fallthru
      _
    // Predicated region
    $region6: #{tpu_custom_call.1} parent=1 // pred_check
      _
    $region7: #{tpu_custom_call.1} parent=1 // pred_check_branch
      %21 = sbr.rel (0) target = $region9
    $region8: #{tpu_custom_call.1} parent=1 // pred_region
      %22 = dma.done [#allocation3], 256
    $region9: #{tpu_custom_call.1} parent=1 // pred_fallthru
      _
    %v23 = vld [vmem:[#allocation2] sm:$0xff]
    %v24 = vld [vmem:[#allocation2 + $0x8] sm:$0xff]
    %v25 = vmul.f32 %v23, 0.125
    %v26 = vmul.f32 %v24, 0.125
    %v27 = vmax.f32 %v25, 0.0
    %v28 = vmax.f32 %v26, 0.0
    %v29 = vmin.f32 %v27, 1.0
    %v30 = vmin.f32 %v28, 1.0
    %31 = vst [vmem:[#allocation5] sm:$0xff] %v29
    %32 = vst [vmem:[#allocation5 + $0x8] sm:$0xff] %v30
    // Predicated region
    $region10: #{tpu_custom_call.1} parent=1 // pred_check
      _
    $region11: #{tpu_custom_call.1} parent=1 // pred_check_branch
      %34 = sbr.rel (0) target = $region13
    $region12: #{tpu_custom_call.1} parent=1 // pred_region
      %s36 = ssub.s32 256, 256
      %37 = vsyncadd [#allocation4], %s36
      %s38 = sshll.u32 [#allocation5], 4
      %s39 = int_to_ptr.vmem [resolvable:$true] %s38
      %44 = dma.vmem_to_hbm [thread:$0]  %s39, 256, %s1, [#allocation4], 128, 128, 8
    $region13: #{tpu_custom_call.1} parent=1 // pred_fallthru
      _
    // Predicated region
    $region14: #{tpu_custom_call.1} parent=1 // pred_check
      _
    $region15: #{tpu_custom_call.1} parent=1 // pred_check_branch
      %46 = sbr.rel (0) target = $region17
    $region16: #{tpu_custom_call.1} parent=1 // pred_region
      %47 = dma.done [#allocation4], 256
    $region17: #{tpu_custom_call.1} parent=1 // pred_fallthru
      _
    %48 = vsyncpa [#allocation3], 1
    %49 = vsyncpa [#allocation4], 1

</llo_original>
